<compile_context>
chip_gen: v7x
topology: tpu7x:2x2x1
jax: 0.10.0
libtpu: 0.0.40
codegen_flags: <defaults>
</compile_context>

<pallas_src>
import functools

import jax
import jax.numpy as jnp
from jax import lax
from jax.experimental import pallas as pl
from jax.experimental.pallas import tpu as pltpu

LANES = 128               # vreg lane width
SUB = 8                   # vreg sublane height (f32)
NUM_CHAINS = 8            # independent accumulation chains per quantity
CHUNK = SUB * NUM_CHAINS  # 64 rows -> 8 accumulator vregs per quantity
MAX_BLOCK_ROWS = 8192     # 8192 x 128 x 4B = 4 MiB per f32 block
NUM_CORES = 2             # TensorCore slices to expose for megacore (v7x)
VMEM_LIMIT_BYTES = 48 * 1024 * 1024  # explicit scoped-VMEM: fits 2x2x(4+4) MiB


def _round_up(x, m):
    return ((x + m - 1) // m) * m


def _dice_partial_kernel(block_rows, valid_rows, num_blocks, last_is_partial,
                         has_extra_steps, pred_ref, label_ref, out_ref):
    """Accumulate per-(sublane,lane) partial sums of p*l, p, l.

    pred_ref : (block_rows, LANES) VMEM tile, native pred dtype
    label_ref: (block_rows, LANES) VMEM tile, native label dtype
    out_ref  : (1, 3, CHUNK, LANES) f32 VMEM accumulator (one per core slice)
    """
    c = pl.program_id(0)
    k = pl.program_id(1)

    @pl.when(k == 0)
    def _():
        out_ref[...] = jnp.zeros_like(out_ref)

    bi = c * pl.num_programs(1) + k        # un-clamped global block index

    def accumulate(masked):
        p = pred_ref[...].astype(jnp.float32)
        l = label_ref[...].astype(jnp.float32)
        if masked:
            row_ids = bi * block_rows + lax.broadcasted_iota(
                jnp.int32, (block_rows, LANES), 0)
            valid = row_ids < valid_rows
            p = jnp.where(valid, p, 0.0)
            l = jnp.where(valid, l, 0.0)

        # (block_rows,128) -> (block_rows/64, 64, 128): tile-preserving
        # relabel; the axis-0 sums become NUM_CHAINS(=8) independent vreg-add
        # chains per quantity (plain VALU adds, no per-step XLU / SMEM chain).
        p3 = p.reshape(block_rows // CHUNK, CHUNK, LANES)
        l3 = l.reshape(block_rows // CHUNK, CHUNK, LANES)

        out_ref[0, 0, :, :] += jnp.sum(p3 * l3, axis=0)   # intersection
        out_ref[0, 1, :, :] += jnp.sum(p3, axis=0)        # sum(pred)
        out_ref[0, 2, :, :] += jnp.sum(l3, axis=0)        # sum(label)

    if not (last_is_partial or has_extra_steps):
        # Hot path when the slab is block-aligned and the grid exactly covers
        # it: no mask, no branches.
        accumulate(masked=False)
    else:
        num_full = num_blocks - (1 if last_is_partial else 0)

        @pl.when(bi < num_full)
        def _():
            accumulate(masked=False)       # unmasked fast path

        if last_is_partial:
            @pl.when(bi == num_blocks - 1)
            def _():
                accumulate(masked=True)    # only the ragged tail pays the mask

        # Over-coverage steps (bi >= num_blocks, from the megacore split) skip
        # accumulation entirely; their (clamped) DMA data is never used.


def ps_dice_loss(pred_y, label_y, *, smooth=1.0, threshold=0.5):
    """Pallas implementation of PSDiceLoss.forward (threshold is unused, as in
    the active PyTorch forward)."""
    del threshold

    pred_flat = pred_y.reshape(-1)          # native dtype (f32 / bf16)
    label_flat = label_y.reshape(-1)        # native (narrow) dtype
    if label_flat.dtype == jnp.bool_:
        # TODO(synk): a zero-copy reinterpret (bool is 1 byte on TPU) would
        # avoid this extra ~1 B/elem pass; XLA bitcast-convert rejects PRED.
        label_flat = label_flat.astype(jnp.int8)

    n = pred_flat.shape[0]
    rows = n // LANES
    n_main = rows * LANES

    # Ragged (<128 element) tail: summed in the tiny host epilogue instead of
    # padding / re-materializing the whole pred & label arrays.
    if n_main != n:
        tail_p = pred_flat[n_main:].astype(jnp.float32)
        tail_l = label_flat[n_main:].astype(jnp.float32)
        tail_inter_s = jnp.sum(tail_p * tail_l)
        tail_pred_s = jnp.sum(tail_p)
        tail_label_s = jnp.sum(tail_l)
        pred_main = pred_flat[:n_main]
        label_main = label_flat[:n_main]
    else:
        tail_inter_s = jnp.float32(0.0)
        tail_pred_s = jnp.float32(0.0)
        tail_label_s = jnp.float32(0.0)
        pred_main = pred_flat
        label_main = label_flat

    if rows == 0:
        # Entire input fits in the ragged tail; no kernel needed.
        return 1.0 - (2.0 * tail_inter_s + smooth) / (
            tail_pred_s + tail_label_s + smooth)

    if rows <= MAX_BLOCK_ROWS:
        # Small input: one block covering the slab. Zero-pad (sum-invariant)
        # to a CHUNK multiple so the chain-split reshape is exact; worst case
        # copies a <=4 MiB array once — negligible.
        block_rows = _round_up(rows, CHUNK)
        if block_rows != rows:
            rpad = (block_rows - rows) * LANES
            pred_main = jnp.pad(pred_main, (0, rpad))
            label_main = jnp.pad(label_main, (0, rpad))
            rows = block_rows
    else:
        # Large input: no host-side pad; the ragged tail block is masked
        # in-kernel, and only on that single grid step.
        block_rows = MAX_BLOCK_ROWS

    pred2d = pred_main.reshape(rows, LANES)
    label2d = label_main.reshape(rows, LANES)

    num_blocks = pl.cdiv(rows, block_rows)
    num_slices = min(NUM_CORES, num_blocks)    # megacore slices (v7x: 2 TCs)
    k_inner = pl.cdiv(num_blocks, num_slices)
    last_is_partial = (rows % block_rows) != 0
    has_extra_steps = (num_slices * k_inner) != num_blocks
    last_block = num_blocks - 1

    def in_map(c, k):
        # Clamp so over-coverage steps re-read the last block (those steps skip
        # accumulation, so the data is never used).
        return (jnp.minimum(c * k_inner + k, last_block), 0)

    kernel = functools.partial(_dice_partial_kernel, block_rows, rows,
                               num_blocks, last_is_partial, has_extra_steps)

    partials = pl.pallas_call(
        kernel,
        out_shape=jax.ShapeDtypeStruct((num_slices, 3, CHUNK, LANES),
                                       jnp.float32),
        grid_spec=pltpu.PrefetchScalarGridSpec(
            num_scalar_prefetch=0,
            grid=(num_slices, k_inner),
            in_specs=[
                pl.BlockSpec((block_rows, LANES), in_map),
                pl.BlockSpec((block_rows, LANES), in_map),
            ],
            out_specs=pl.BlockSpec((1, 3, CHUNK, LANES),
                                   lambda c, k: (c, 0, 0, 0)),
        ),
        compiler_params=pltpu.CompilerParams(
            dimension_semantics=("parallel", "arbitrary"),
            vmem_limit_bytes=VMEM_LIMIT_BYTES,
        ),
    )(pred2d, label2d)

    # Tiny host epilogue: one reduction over num_slices*3*CHUNK*LANES f32
    # partials plus the scalar Dice formula (keeps `smooth` out of the kernel;
    # per-lane partials also improve summation accuracy vs. a scalar sum).
    sums = jnp.sum(partials, axis=(0, 2, 3))          # (3,)
    inter = sums[0] + tail_inter_s
    p_sum = sums[1] + tail_pred_s
    l_sum = sums[2] + tail_label_s
    return 1.0 - (2.0 * inter + smooth) / (p_sum + l_sum + smooth)


if __name__ == "__main__":
    key = jax.random.PRNGKey(0)
    k1, k2 = jax.random.split(key)

    # small shapes consistent with a segmentation output: NCHW = (2, 4, 16, 16)
    pred_y = jax.nn.sigmoid(jax.random.normal(k1, (2, 4, 16, 16), jnp.float32))
    # labels in a narrow native dtype (int8), cast to f32 inside the kernel
    label_y = (jax.random.uniform(k2, (2, 4, 16, 16)) > 0.5).astype(jnp.int8)

    smooth = 1.0
    threshold = 0.5

    loss = ps_dice_loss(pred_y, label_y, smooth=smooth, threshold=threshold)
    loss = jax.block_until_ready(loss)

    # pure-JAX reference for sanity
    lab_f = label_y.astype(jnp.float32)
    inter = jnp.sum(pred_y * lab_f)
    ref = 1.0 - (2.0 * inter + smooth) / (jnp.sum(pred_y) + jnp.sum(lab_f) + smooth)
    assert jnp.allclose(loss, ref, rtol=1e-5, atol=1e-5), (loss, ref)

    print("KERNEL_OK")
</pallas_src>

<mosaic_0001>
module attributes {stable_mosaic.version = 11 : i64} {
  func.func @_dice_partial_kernel(%arg0: i32, %arg1: i32, %arg2: memref<64x128xf32, #tpu.memory_space<vmem>>, %arg3: memref<64x128xi8, #tpu.memory_space<vmem>>, %arg4: memref<1x3x64x128xf32, #tpu.memory_space<vmem>>) attributes {dimension_semantics = [#tpu.dimension_semantics<parallel>, #tpu.dimension_semantics<arbitrary>], iteration_bounds = array<i64: 1, 1>, scalar_prefetch = 0 : i64, scratch_operands = 0 : i64, tpu.core_type = #tpu.core_type<tc>, window_params = [{transform_indices = @transform_0, window_bounds = array<i64: 64, 128>}, {transform_indices = @transform_1, window_bounds = array<i64: 64, 128>}, {transform_indices = @transform_2, window_bounds = array<i64: 1, 3, 64, 128>}]} {
    %c0_i32 = arith.constant 0 : i32
    %0 = arith.cmpi eq, %arg1, %c0_i32 : i32
    %1 = arith.extui %0 : i1 to i32
    %c0_i32_0 = arith.constant 0 : i32
    %2 = arith.cmpi ne, %1, %c0_i32_0 : i32
    scf.if %2 {
      %cst_28 = arith.constant 0.000000e+00 : f32
      %30 = vector.broadcast %cst_28 : f32 to vector<1x3x64x128xf32>
      %c0_29 = arith.constant 0 : index
      %c0_30 = arith.constant 0 : index
      %c0_31 = arith.constant 0 : index
      %c0_32 = arith.constant 0 : index
      %31 = vector.load %arg4[%c0_29, %c0_30, %c0_31, %c0_32] : memref<1x3x64x128xf32, #tpu.memory_space<vmem>>, vector<1x3x64x128xf32>
      tpu.vector_store %arg4[%c0_29, %c0_30, %c0_31, %c0_32], %30 {strides = array<i32>} : memref<1x3x64x128xf32, #tpu.memory_space<vmem>>, vector<1x3x64x128xf32>,
    } else {
    }
    %c0 = arith.constant 0 : index
    %c0_1 = arith.constant 0 : index
    %3 = vector.load %arg2[%c0, %c0_1] : memref<64x128xf32, #tpu.memory_space<vmem>>, vector<64x128xf32>
    %c0_2 = arith.constant 0 : index
    %c0_3 = arith.constant 0 : index
    %4 = vector.load %arg3[%c0_2, %c0_3] : memref<64x128xi8, #tpu.memory_space<vmem>>, vector<64x128xi8>
    %5 = arith.sitofp %4 : vector<64x128xi8> to vector<64x128xf32>
    %6 = vector.shape_cast %3 : vector<64x128xf32> to vector<1x64x128xf32>
    %7 = vector.shape_cast %5 : vector<64x128xf32> to vector<1x64x128xf32>
    %c0_4 = arith.constant 0 : index
    %c0_5 = arith.constant 0 : index
    %c0_6 = arith.constant 0 : index
    %c0_7 = arith.constant 0 : index
    %8 = vector.load %arg4[%c0_4, %c0_5, %c0_6, %c0_7] : memref<1x3x64x128xf32, #tpu.memory_space<vmem>>, vector<1x1x64x128xf32>
    %9 = vector.shape_cast %8 : vector<1x1x64x128xf32> to vector<64x128xf32>
    %10 = arith.mulf %6, %7 : vector<1x64x128xf32>
    %cst = arith.constant dense<0.000000e+00> : vector<64x128xf32>
    %11 = vector.multi_reduction <add>, %10, %cst [0] : vector<1x64x128xf32> to vector<64x128xf32>
    %12 = arith.addf %9, %11 : vector<64x128xf32>
    %c0_8 = arith.constant 0 : index
    %c0_9 = arith.constant 0 : index
    %c0_10 = arith.constant 0 : index
    %c0_11 = arith.constant 0 : index
    %13 = vector.load %arg4[%c0_8, %c0_9, %c0_10, %c0_11] : memref<1x3x64x128xf32, #tpu.memory_space<vmem>>, vector<1x1x64x128xf32>
    %14 = vector.shape_cast %13 : vector<1x1x64x128xf32> to vector<64x128xf32>
    %15 = vector.shape_cast %12 : vector<64x128xf32> to vector<1x1x64x128xf32>
    tpu.vector_store %arg4[%c0_8, %c0_9, %c0_10, %c0_11], %15 {strides = array<i32>} : memref<1x3x64x128xf32, #tpu.memory_space<vmem>>, vector<1x1x64x128xf32>,
    %c0_12 = arith.constant 0 : index
    %c1 = arith.constant 1 : index
    %c0_13 = arith.constant 0 : index
    %c0_14 = arith.constant 0 : index
    %16 = vector.load %arg4[%c0_12, %c1, %c0_13, %c0_14] : memref<1x3x64x128xf32, #tpu.memory_space<vmem>>, vector<1x1x64x128xf32>
    %17 = vector.shape_cast %16 : vector<1x1x64x128xf32> to vector<64x128xf32>
    %cst_15 = arith.constant dense<0.000000e+00> : vector<64x128xf32>
    %18 = vector.multi_reduction <add>, %6, %cst_15 [0] : vector<1x64x128xf32> to vector<64x128xf32>
    %19 = arith.addf %17, %18 : vector<64x128xf32>
    %c0_16 = arith.constant 0 : index
    %c1_17 = arith.constant 1 : index
    %c0_18 = arith.constant 0 : index
    %c0_19 = arith.constant 0 : index
    %20 = vector.load %arg4[%c0_16, %c1_17, %c0_18, %c0_19] : memref<1x3x64x128xf32, #tpu.memory_space<vmem>>, vector<1x1x64x128xf32>
    %21 = vector.shape_cast %20 : vector<1x1x64x128xf32> to vector<64x128xf32>
    %22 = vector.shape_cast %19 : vector<64x128xf32> to vector<1x1x64x128xf32>
    tpu.vector_store %arg4[%c0_16, %c1_17, %c0_18, %c0_19], %22 {strides = array<i32>} : memref<1x3x64x128xf32, #tpu.memory_space<vmem>>, vector<1x1x64x128xf32>,
    %c0_20 = arith.constant 0 : index
    %c2 = arith.constant 2 : index
    %c0_21 = arith.constant 0 : index
    %c0_22 = arith.constant 0 : index
    %23 = vector.load %arg4[%c0_20, %c2, %c0_21, %c0_22] : memref<1x3x64x128xf32, #tpu.memory_space<vmem>>, vector<1x1x64x128xf32>
    %24 = vector.shape_cast %23 : vector<1x1x64x128xf32> to vector<64x128xf32>
    %cst_23 = arith.constant dense<0.000000e+00> : vector<64x128xf32>
    %25 = vector.multi_reduction <add>, %7, %cst_23 [0] : vector<1x64x128xf32> to vector<64x128xf32>
    %26 = arith.addf %24, %25 : vector<64x128xf32>
    %c0_24 = arith.constant 0 : index
    %c2_25 = arith.constant 2 : index
    %c0_26 = arith.constant 0 : index
    %c0_27 = arith.constant 0 : index
    %27 = vector.load %arg4[%c0_24, %c2_25, %c0_26, %c0_27] : memref<1x3x64x128xf32, #tpu.memory_space<vmem>>, vector<1x1x64x128xf32>
    %28 = vector.shape_cast %27 : vector<1x1x64x128xf32> to vector<64x128xf32>
    %29 = vector.shape_cast %26 : vector<64x128xf32> to vector<1x1x64x128xf32>
    tpu.vector_store %arg4[%c0_24, %c2_25, %c0_26, %c0_27], %29 {strides = array<i32>} : memref<1x3x64x128xf32, #tpu.memory_space<vmem>>, vector<1x1x64x128xf32>,
    return
  }
  func.func @transform_0(%arg0: i32, %arg1: i32) -> (i32, i32) {
    %c1_i32 = arith.constant 1 : i32
    %0 = arith.muli %arg0, %c1_i32 : i32
    %1 = arith.addi %0, %arg1 : i32
    %c0_i32 = arith.constant 0 : i32
    %2 = arith.minsi %1, %c0_i32 : i32
    %c0_i32_0 = arith.constant 0 : i32
    %c0_i32_1 = arith.constant 0 : i32
    return %2, %c0_i32_0 : i32, i32
  }
  func.func @transform_1(%arg0: i32, %arg1: i32) -> (i32, i32) {
    %c1_i32 = arith.constant 1 : i32
    %0 = arith.muli %arg0, %c1_i32 : i32
    %1 = arith.addi %0, %arg1 : i32
    %c0_i32 = arith.constant 0 : i32
    %2 = arith.minsi %1, %c0_i32 : i32
    %c0_i32_0 = arith.constant 0 : i32
    %c0_i32_1 = arith.constant 0 : i32
    return %2, %c0_i32_0 : i32, i32
  }
  func.func @transform_2(%arg0: i32, %arg1: i32) -> (i32, i32, i32, i32) {
    %c0_i32 = arith.constant 0 : i32
    %c0_i32_0 = arith.constant 0 : i32
    %c0_i32_1 = arith.constant 0 : i32
    %c0_i32_2 = arith.constant 0 : i32
    return %arg0, %c0_i32, %c0_i32_0, %c0_i32_1 : i32, i32, i32, i32
  }
}

</mosaic_0001>

<llo_original>
// kernel: tpu_custom_call.1
$region0: #{tpu_custom_call.1}
  #allocation0 [shape = 'u32[]', space=smem, size = 0x4, offset = 0x4, fixed_abs, tag = 'smem constant byte address 0x4 - core index']
  #allocation1 [shape = 'u32[144,128]{1,0:T(1,128)}', space=vmem, size = 0x12000, scoped, tag = 'internal scratch']
  %s0 = inlined_call_operand.hbm [shape: f32[64,128], index: 0, kind: input, shape index: {}]
  %s1 = inlined_call_operand.hbm [shape: s8[64,128], index: 1, kind: input, shape index: {}]
  %s2 = inlined_call_operand.hbm [shape: f32[1,3,64,128], index: 2, kind: output, shape index: {}]
  %s3 = sld [smem:[#allocation0]]
  $region30: #{tpu_custom_call.1} parent=0
    _
  %s5 = ssub.s32 1, %s3
  %s6 = scalar_select 0, %s5, %s3
  $region1: #{tpu_custom_call.1} parent=0
    #allocation2 [shape = 'u8[32768]{0}', space=vmem, size = 0x8000, scoped, tag = 'input window, operand 0, single buffered']
    #allocation3 [shape = 's32[1]{0}', space=sflag, size = 0x4, scoped, tag = 'scoped memory for tpu_custom_call.1']
    #allocation4 [shape = 's32[1]{0}', space=sflag, size = 0x4, scoped, tag = 'scoped memory for tpu_custom_call.1']
    #allocation5 [shape = 'u8[8192]{0}', space=vmem, size = 0x2000, scoped, tag = 'input window, operand 1, single buffered']
    #allocation6 [shape = 's32[1]{0}', space=sflag, size = 0x4, scoped, tag = 'scoped memory for tpu_custom_call.1']
    #allocation7 [shape = 'u8[98304]{0}', space=vmem, size = 0x18000, scoped, tag = 'output window, operand 0, single buffered']
    %7 = vsyncpa [#allocation3], 0
    %8 = vsyncpa [#allocation6], 0
    %9 = vsyncpa [#allocation4], 0
    // Predicated region
    $region2: #{tpu_custom_call.1} parent=1 // pred_check
      _
    $region3: #{tpu_custom_call.1} parent=1 // pred_check_branch
      %11 = sbr.rel (0) target = $region5
    $region4: #{tpu_custom_call.1} parent=1 // pred_region
      %s12 = sadd.s32 0, 0
      %p13 = scmp.lt.s32.totalorder %s12, 0
      %s14 = scalar_select %p13, %s12, 0
      %s15 = smul.u32 8, %s14
      %s17 = ssub.s32 1024, 1024
      %18 = vsyncadd [#allocation3], %s17
      %s19 = smul.addr %s15, 128
      %s20 = scalar_lea.hbm %s0, %s19
      %s21 = sshll.u32 [#allocation2], 4
      %s22 = int_to_ptr.vmem [resolvable:$true] %s21
      %27 = dma.hbm_to_vmem [thread:$0]  %s20, 1024, %s22, [#allocation3], 128, 128, 8
    $region5: #{tpu_custom_call.1} parent=1 // pred_fallthru
      _
    // Predicated region
    $region6: #{tpu_custom_call.1} parent=1 // pred_check
      _
    $region7: #{tpu_custom_call.1} parent=1 // pred_check_branch
      %29 = sbr.rel (0) target = $region9
    $region8: #{tpu_custom_call.1} parent=1 // pred_region
      %s30 = sadd.s32 0, 0
      %p31 = scmp.lt.s32.totalorder %s30, 0
      %s32 = scalar_select %p31, %s30, 0
      %s33 = smul.u32 2, %s32
      %s35 = ssub.s32 256, 256
      %36 = vsyncadd [#allocation6], %s35
      %s37 = smul.addr %s33, 128
      %s38 = scalar_lea.hbm %s1, %s37
      %s39 = sshll.u32 [#allocation5], 4
      %s40 = int_to_ptr.vmem [resolvable:$true] %s39
      %45 = dma.hbm_to_vmem [thread:$0]  %s38, 256, %s40, [#allocation6], 128, 128, 8
    $region9: #{tpu_custom_call.1} parent=1 // pred_fallthru
      _
    // Predicated region
    $region10: #{tpu_custom_call.1} parent=1 // pred_check
      _
    $region11: #{tpu_custom_call.1} parent=1 // pred_check_branch
      %47 = sbr.rel (0) target = $region13
    $region12: #{tpu_custom_call.1} parent=1 // pred_region
      %48 = dma.done [#allocation3], 1024
    $region13: #{tpu_custom_call.1} parent=1 // pred_fallthru
      _
    // Predicated region
    $region14: #{tpu_custom_call.1} parent=1 // pred_check
      _
    $region15: #{tpu_custom_call.1} parent=1 // pred_check_branch
      %50 = sbr.rel (0) target = $region17
    $region16: #{tpu_custom_call.1} parent=1 // pred_region
      %51 = dma.done [#allocation6], 256
    $region17: #{tpu_custom_call.1} parent=1 // pred_fallthru
      _
    %s52 = sadd.s32 0, 0
    %p53 = scmp.lt.s32.totalorder %s52, 0
    %s54 = scalar_select %p53, %s52, 0
    %s55 = smul.u32 8, %s54
    %s56 = sadd.s32 0, 0
    %p57 = scmp.lt.s32.totalorder %s56, 0
    %s58 = scalar_select %p57, %s56, 0
    %s59 = smul.u32 2, %s58
    %p60 = scmp.eq.s32.totalorder 0, 0
    // Predicated region
    $region18: #{tpu_custom_call.1} parent=1 // pred_check
      %p61 = pneg %p60
    $region19: #{tpu_custom_call.1} parent=1 // pred_check_branch
      %63 = sbr.rel (%p61) target = $region21
    $region20: #{tpu_custom_call.1} parent=1 // pred_region
      %64 = vst [vmem:[#allocation7] sm:$0xff] 0.0
      %65 = vst [vmem:[#allocation7 + $0x8] sm:$0xff] 0.0
      %66 = vst [vmem:[#allocation7 + $0x10] sm:$0xff] 0.0
      %67 = vst [vmem:[#allocation7 + $0x18] sm:$0xff] 0.0
      %68 = vst [vmem:[#allocation7 + $0x20] sm:$0xff] 0.0
      %69 = vst [vmem:[#allocation7 + $0x28] sm:$0xff] 0.0
      %70 = vst [vmem:[#allocation7 + $0x30] sm:$0xff] 0.0
      %71 = vst [vmem:[#allocation7 + $0x38] sm:$0xff] 0.0
      %72 = vst [vmem:[#allocation7 + $0x40] sm:$0xff] 0.0
      %73 = vst [vmem:[#allocation7 + $0x48] sm:$0xff] 0.0
      %74 = vst [vmem:[#allocation7 + $0x50] sm:$0xff] 0.0
      %75 = vst [vmem:[#allocation7 + $0x58] sm:$0xff] 0.0
      %76 = vst [vmem:[#allocation7 + $0x60] sm:$0xff] 0.0
      %77 = vst [vmem:[#allocation7 + $0x68] sm:$0xff] 0.0
      %78 = vst [vmem:[#allocation7 + $0x70] sm:$0xff] 0.0
      %79 = vst [vmem:[#allocation7 + $0x78] sm:$0xff] 0.0
      %80 = vst [vmem:[#allocation7 + $0x80] sm:$0xff] 0.0
      %81 = vst [vmem:[#allocation7 + $0x88] sm:$0xff] 0.0
      %82 = vst [vmem:[#allocation7 + $0x90] sm:$0xff] 0.0
      %83 = vst [vmem:[#allocation7 + $0x98] sm:$0xff] 0.0
      %84 = vst [vmem:[#allocation7 + $0xa0] sm:$0xff] 0.0
      %85 = vst [vmem:[#allocation7 + $0xa8] sm:$0xff] 0.0
      %86 = vst [vmem:[#allocation7 + $0xb0] sm:$0xff] 0.0
      %87 = vst [vmem:[#allocation7 + $0xb8] sm:$0xff] 0.0
    $region21: #{tpu_custom_call.1} parent=1 // pred_fallthru
      _
    %v88 = vld [vmem:[#allocation2] sm:$0xff]
    %v89 = vld [vmem:[#allocation2 + $0x8] sm:$0xff]
    %v90 = vld [vmem:[#allocation2 + $0x10] sm:$0xff]
    %v91 = vld [vmem:[#allocation2 + $0x18] sm:$0xff]
    %v92 = vld [vmem:[#allocation2 + $0x20] sm:$0xff]
    %v93 = vld [vmem:[#allocation2 + $0x28] sm:$0xff]
    %v94 = vld [vmem:[#allocation2 + $0x30] sm:$0xff]
    %v95 = vld [vmem:[#allocation2 + $0x38] sm:$0xff]
    %v96 = vld [vmem:[#allocation5] sm:$0xff]
    %v97 = vld [vmem:[#allocation5 + $0x8] sm:$0xff]
    %v98 = vunpack.c.0.s8 %v96
    %v99 = vunpack.c.1.s8 %v96
    %v100 = vunpack.c.2.s8 %v96
    %v101 = vunpack.c.3.s8 %v96
    %v102 = vunpack.c.0.s8 %v97
    %v103 = vunpack.c.1.s8 %v97
    %v104 = vunpack.c.2.s8 %v97
    %v105 = vunpack.c.3.s8 %v97
    %v106 = vcvt.s32.f32 %v98
    %v107 = vcvt.s32.f32 %v99
    %v108 = vcvt.s32.f32 %v100
    %v109 = vcvt.s32.f32 %v101
    %v110 = vcvt.s32.f32 %v102
    %v111 = vcvt.s32.f32 %v103
    %v112 = vcvt.s32.f32 %v104
    %v113 = vcvt.s32.f32 %v105
    %v114 = vld [vmem:[#allocation7] sm:$0xff]
    %v115 = vld [vmem:[#allocation7 + $0x8] sm:$0xff]
    %v116 = vld [vmem:[#allocation7 + $0x10] sm:$0xff]
    %v117 = vld [vmem:[#allocation7 + $0x18] sm:$0xff]
    %v118 = vld [vmem:[#allocation7 + $0x20] sm:$0xff]
    %v119 = vld [vmem:[#allocation7 + $0x28] sm:$0xff]
    %v120 = vld [vmem:[#allocation7 + $0x30] sm:$0xff]
    %v121 = vld [vmem:[#allocation7 + $0x38] sm:$0xff]
    %v122 = vmul.f32 %v88, %v106
    %v123 = vmul.f32 %v89, %v107
    %v124 = vmul.f32 %v90, %v108
    %v125 = vmul.f32 %v91, %v109
    %v126 = vmul.f32 %v92, %v110
    %v127 = vmul.f32 %v93, %v111
    %v128 = vmul.f32 %v94, %v112
    %v129 = vmul.f32 %v95, %v113
    %v130 = vadd.f32 %v122, 0.0
    %v131 = vadd.f32 %v123, 0.0
    %v132 = vadd.f32 %v124, 0.0
    %v133 = vadd.f32 %v125, 0.0
    %v134 = vadd.f32 %v126, 0.0
    %v135 = vadd.f32 %v127, 0.0
    %v136 = vadd.f32 %v128, 0.0
    %v137 = vadd.f32 %v129, 0.0
    %v138 = vadd.f32 %v114, %v130
    %v139 = vadd.f32 %v115, %v131
    %v140 = vadd.f32 %v116, %v132
    %v141 = vadd.f32 %v117, %v133
    %v142 = vadd.f32 %v118, %v134
    %v143 = vadd.f32 %v119, %v135
    %v144 = vadd.f32 %v120, %v136
    %v145 = vadd.f32 %v121, %v137
    %146 = vst [vmem:[#allocation7] sm:$0xff] %v138
    %147 = vst [vmem:[#allocation7 + $0x8] sm:$0xff] %v139
    %148 = vst [vmem:[#allocation7 + $0x10] sm:$0xff] %v140
    %149 = vst [vmem:[#allocation7 + $0x18] sm:$0xff] %v141
    %150 = vst [vmem:[#allocation7 + $0x20] sm:$0xff] %v142
    %151 = vst [vmem:[#allocation7 + $0x28] sm:$0xff] %v143
    %152 = vst [vmem:[#allocation7 + $0x30] sm:$0xff] %v144
    %153 = vst [vmem:[#allocation7 + $0x38] sm:$0xff] %v145
    %s154 = scalar_lea.vmem [#allocation7], 64
    %v155 = vld [vmem:[%s154] sm:$0xff]
    %v156 = vld [vmem:[%s154 + $0x8] sm:$0xff]
    %v157 = vld [vmem:[%s154 + $0x10] sm:$0xff]
    %v158 = vld [vmem:[%s154 + $0x18] sm:$0xff]
    %v159 = vld [vmem:[%s154 + $0x20] sm:$0xff]
    %v160 = vld [vmem:[%s154 + $0x28] sm:$0xff]
    %v161 = vld [vmem:[%s154 + $0x30] sm:$0xff]
    %v162 = vld [vmem:[%s154 + $0x38] sm:$0xff]
    %v163 = vadd.f32 %v88, 0.0
    %v164 = vadd.f32 %v89, 0.0
    %v165 = vadd.f32 %v90, 0.0
    %v166 = vadd.f32 %v91, 0.0
    %v167 = vadd.f32 %v92, 0.0
    %v168 = vadd.f32 %v93, 0.0
    %v169 = vadd.f32 %v94, 0.0
    %v170 = vadd.f32 %v95, 0.0
    %v171 = vadd.f32 %v155, %v163
    %v172 = vadd.f32 %v156, %v164
    %v173 = vadd.f32 %v157, %v165
    %v174 = vadd.f32 %v158, %v166
    %v175 = vadd.f32 %v159, %v167
    %v176 = vadd.f32 %v160, %v168
    %v177 = vadd.f32 %v161, %v169
    %v178 = vadd.f32 %v162, %v170
    %179 = vst [vmem:[%s154] sm:$0xff] %v171
    %180 = vst [vmem:[%s154 + $0x8] sm:$0xff] %v172
    %181 = vst [vmem:[%s154 + $0x10] sm:$0xff] %v173
    %182 = vst [vmem:[%s154 + $0x18] sm:$0xff] %v174
    %183 = vst [vmem:[%s154 + $0x20] sm:$0xff] %v175
    %184 = vst [vmem:[%s154 + $0x28] sm:$0xff] %v176
    %185 = vst [vmem:[%s154 + $0x30] sm:$0xff] %v177
    %186 = vst [vmem:[%s154 + $0x38] sm:$0xff] %v178
    %s187 = scalar_lea.vmem [#allocation7], 128
    %v188 = vld [vmem:[%s187] sm:$0xff]
    %v189 = vld [vmem:[%s187 + $0x8] sm:$0xff]
    %v190 = vld [vmem:[%s187 + $0x10] sm:$0xff]
    %v191 = vld [vmem:[%s187 + $0x18] sm:$0xff]
    %v192 = vld [vmem:[%s187 + $0x20] sm:$0xff]
    %v193 = vld [vmem:[%s187 + $0x28] sm:$0xff]
    %v194 = vld [vmem:[%s187 + $0x30] sm:$0xff]
    %v195 = vld [vmem:[%s187 + $0x38] sm:$0xff]
    %v196 = vadd.f32 %v106, 0.0
    %v197 = vadd.f32 %v107, 0.0
    %v198 = vadd.f32 %v108, 0.0
    %v199 = vadd.f32 %v109, 0.0
    %v200 = vadd.f32 %v110, 0.0
    %v201 = vadd.f32 %v111, 0.0
    %v202 = vadd.f32 %v112, 0.0
    %v203 = vadd.f32 %v113, 0.0
    %v204 = vadd.f32 %v188, %v196
    %v205 = vadd.f32 %v189, %v197
    %v206 = vadd.f32 %v190, %v198
    %v207 = vadd.f32 %v191, %v199
    %v208 = vadd.f32 %v192, %v200
    %v209 = vadd.f32 %v193, %v201
    %v210 = vadd.f32 %v194, %v202
    %v211 = vadd.f32 %v195, %v203
    %212 = vst [vmem:[%s187] sm:$0xff] %v204
    %213 = vst [vmem:[%s187 + $0x8] sm:$0xff] %v205
    %214 = vst [vmem:[%s187 + $0x10] sm:$0xff] %v206
    %215 = vst [vmem:[%s187 + $0x18] sm:$0xff] %v207
    %216 = vst [vmem:[%s187 + $0x20] sm:$0xff] %v208
    %217 = vst [vmem:[%s187 + $0x28] sm:$0xff] %v209
    %218 = vst [vmem:[%s187 + $0x30] sm:$0xff] %v210
    %219 = vst [vmem:[%s187 + $0x38] sm:$0xff] %v211
    // Predicated region
    $region22: #{tpu_custom_call.1} parent=1 // pred_check
      _
    $region23: #{tpu_custom_call.1} parent=1 // pred_check_branch
      %221 = sbr.rel (0) target = $region25
    $region24: #{tpu_custom_call.1} parent=1 // pred_region
      %s223 = ssub.s32 3072, 3072
      %224 = vsyncadd [#allocation4], %s223
      %s225 = sshll.u32 [#allocation7], 4
      %s226 = int_to_ptr.vmem [resolvable:$true] %s225
      %231 = dma.vmem_to_hbm [thread:$0]  %s226, 3072, %s2, [#allocation4], 128, 128, 8
    $region25: #{tpu_custom_call.1} parent=1 // pred_fallthru
      _
    // Predicated region
    $region26: #{tpu_custom_call.1} parent=1 // pred_check
      _
    $region27: #{tpu_custom_call.1} parent=1 // pred_check_branch
      %233 = sbr.rel (0) target = $region29
    $region28: #{tpu_custom_call.1} parent=1 // pred_region
      %234 = dma.done [#allocation4], 3072
    $region29: #{tpu_custom_call.1} parent=1 // pred_fallthru
      _
    %235 = vsyncpa [#allocation3], 1
    %236 = vsyncpa [#allocation6], 1
    %237 = vsyncpa [#allocation4], 1

</llo_original>
